<compile_context>
chip_gen: v5e
topology: v5e:2x2
jax: 0.10.0
libtpu: 0.0.40
codegen_flags: <defaults>
</compile_context>

<pallas_src>
import jax
import jax.numpy as jnp
from jax.experimental import pallas as pl
from jax.experimental.pallas import tpu as pltpu


def _make_pad_kernel(H: int, W: int):
    def kernel(x_ref, o_ref):
        # x_ref block: (TBC, H, W); o_ref block: (TBC, H+1, W+1)
        n = o_ref.shape[0]
        # Interior written exactly once (no full-tile zero followed by overwrite).
        o_ref[:, 0:H, 0:W] = x_ref[...].astype(o_ref.dtype)
        # Zero only the pad: bottom row and right column (overlap at [H, W] is fine).
        o_ref[:, H:H + 1, :] = jnp.zeros((n, 1, W + 1), dtype=o_ref.dtype)
        o_ref[:, :, W:W + 1] = jnp.zeros((n, H + 1, 1), dtype=o_ref.dtype)

    return kernel


def zero_pad_bottom_and_right(x: jax.Array) -> jax.Array:
    """NCHW zero-pad of one row (bottom) and one column (right); output float32."""
    B, C, H, W = x.shape
    BC = B * C
    x2 = x.reshape(BC, H, W)  # contiguous fold of batch*channels -> free reshape

    # Per-(b,c) slab working set: input plane + padded f32 output plane.
    in_slab = H * W * x.dtype.itemsize
    out_slab = (H + 1) * (W + 1) * 4
    slab = in_slab + out_slab

    # Batch enough slabs per grid step to move multi-MiB per block while keeping
    # (in+out) x 2 double-buffers <= ~8 MiB (safe under v5e's 16 MiB scoped VMEM).
    budget = 4 * 1024 * 1024
    tbc = max(1, budget // slab)
    tbc = min(tbc, BC)
    if BC >= 2:
        # Keep at least 2 grid steps so the 'parallel' axis can use both v7x TCs.
        tbc = min(tbc, -(-BC // 2))
    tbc = int(tbc)
    grid = (pl.cdiv(BC, tbc),)

    # TODO(synk): for very large single planes (slab alone > budget, e.g. 2048x2048
    # f32) also tile H so one block still fits scoped VMEM on v7x/v5e.
    block_bytes = 2 * tbc * slab  # both pipeline buffers of the in+out blocks
    compiler_params = pltpu.CompilerParams(
        dimension_semantics=("parallel",),
        vmem_limit_bytes=max(block_bytes + (2 << 20), 16 * 1024 * 1024),
    )

    out2 = pl.pallas_call(
        _make_pad_kernel(H, W),
        out_shape=jax.ShapeDtypeStruct((BC, H + 1, W + 1), jnp.float32),
        grid_spec=pltpu.PrefetchScalarGridSpec(
            num_scalar_prefetch=0,
            grid=grid,
            in_specs=[
                # Last two dims equal the full array dims -> (8,128) rule not triggered.
                pl.BlockSpec((tbc, H, W), lambda i: (i, 0, 0)),
            ],
            out_specs=pl.BlockSpec((tbc, H + 1, W + 1), lambda i: (i, 0, 0)),
        ),
        compiler_params=compiler_params,
    )(x2)

    return out2.reshape(B, C, H + 1, W + 1)


if __name__ == "__main__":
    key = jax.random.PRNGKey(0)
    B, C, H, W = 2, 4, 16, 16
    x = jax.random.normal(key, (B, C, H, W), dtype=jnp.float32)

    out = zero_pad_bottom_and_right(x)
    out = jax.block_until_ready(out)

    # Reference check (plain JAX)
    ref = jnp.pad(x.astype(jnp.float32), ((0, 0), (0, 0), (0, 1), (0, 1)))
    assert out.shape == (B, C, H + 1, W + 1), out.shape
    assert out.dtype == jnp.float32, out.dtype
    assert jnp.allclose(out, ref), "mismatch vs reference"

    print("KERNEL_OK")
</pallas_src>

<mosaic_0001>
module attributes {stable_mosaic.version = 11 : i64} {
  func.func @kernel(%arg0: i32, %arg1: memref<4x16x16xf32, #tpu.memory_space<vmem>>, %arg2: memref<4x17x17xf32, #tpu.memory_space<vmem>>) attributes {dimension_semantics = [#tpu.dimension_semantics<parallel>], iteration_bounds = array<i64: 2>, scalar_prefetch = 0 : i64, scratch_operands = 0 : i64, tpu.core_type = #tpu.core_type<tc>, window_params = [{transform_indices = @transform_0, window_bounds = array<i64: 4, 16, 16>}, {transform_indices = @transform_1, window_bounds = array<i64: 4, 17, 17>}]} {
    %c0 = arith.constant 0 : index
    %c0_0 = arith.constant 0 : index
    %c0_1 = arith.constant 0 : index
    %0 = vector.load %arg1[%c0, %c0_0, %c0_1] : memref<4x16x16xf32, #tpu.memory_space<vmem>>, vector<4x16x16xf32>
    %c0_2 = arith.constant 0 : index
    %c0_3 = arith.constant 0 : index
    %c0_4 = arith.constant 0 : index
    %1 = vector.load %arg2[%c0_2, %c0_3, %c0_4] : memref<4x17x17xf32, #tpu.memory_space<vmem>>, vector<4x16x16xf32>
    tpu.vector_store %arg2[%c0_2, %c0_3, %c0_4], %0 {strides = array<i32>} : memref<4x17x17xf32, #tpu.memory_space<vmem>>, vector<4x16x16xf32>,
    %cst = arith.constant 0.000000e+00 : f32
    %2 = vector.broadcast %cst : f32 to vector<4x1x17xf32>
    %c0_5 = arith.constant 0 : index
    %c16 = arith.constant 16 : index
    %c0_6 = arith.constant 0 : index
    %3 = vector.load %arg2[%c0_5, %c16, %c0_6] : memref<4x17x17xf32, #tpu.memory_space<vmem>>, vector<4x1x17xf32>
    tpu.vector_store %arg2[%c0_5, %c16, %c0_6], %2 {strides = array<i32>} : memref<4x17x17xf32, #tpu.memory_space<vmem>>, vector<4x1x17xf32>,
    %cst_7 = arith.constant 0.000000e+00 : f32
    %4 = vector.broadcast %cst_7 : f32 to vector<4x17x1xf32>
    %c0_8 = arith.constant 0 : index
    %c0_9 = arith.constant 0 : index
    %c16_10 = arith.constant 16 : index
    %5 = vector.load %arg2[%c0_8, %c0_9, %c16_10] : memref<4x17x17xf32, #tpu.memory_space<vmem>>, vector<4x17x1xf32>
    tpu.vector_store %arg2[%c0_8, %c0_9, %c16_10], %4 {strides = array<i32>} : memref<4x17x17xf32, #tpu.memory_space<vmem>>, vector<4x17x1xf32>,
    return
  }
  func.func @transform_0(%arg0: i32) -> (i32, i32, i32) {
    %c0_i32 = arith.constant 0 : i32
    %c0_i32_0 = arith.constant 0 : i32
    %c0_i32_1 = arith.constant 0 : i32
    return %arg0, %c0_i32, %c0_i32_0 : i32, i32, i32
  }
  func.func @transform_1(%arg0: i32) -> (i32, i32, i32) {
    %c0_i32 = arith.constant 0 : i32
    %c0_i32_0 = arith.constant 0 : i32
    %c0_i32_1 = arith.constant 0 : i32
    return %arg0, %c0_i32, %c0_i32_0 : i32, i32, i32
  }
}

</mosaic_0001>

<llo_original>
// kernel: tpu_custom_call.1
$region0: #{tpu_custom_call.1}
  #allocation0 [shape = 'u32[]', space=smem, size = 0x4, offset = 0x4, fixed_abs, tag = 'smem constant byte address 0x4 - core index']
  #allocation1 [shape = 'u32[72,128]{1,0:T(1,128)}', space=vmem, size = 0x9000, scoped, tag = 'internal scratch']
  %s0 = inlined_call_operand.hbm [shape: f32[8,16,16], index: 0, kind: input, shape index: {}]
  %s1 = inlined_call_operand.vmem [shape: f32[8,17,17], index: 1, kind: output, shape index: {}]
  %s2 = sld [smem:[#allocation0]]
  $region41: #{tpu_custom_call.1} parent=0
    _
  %s4 = ssub.s32 1, %s2
  %s5 = scalar_select 0, %s4, %s2
  $region1: #{tpu_custom_call.1} parent=0
    #allocation2 [shape = 'u8[65536]{0}', space=vmem, size = 0x10000, scoped, tag = 'input window, operand 0']
    #allocation3 [shape = 's32[2]{0}', space=sflag, size = 0x8, scoped, tag = 'scoped memory for tpu_custom_call.1']
    %6 = vsyncpa [#allocation3], 0
    %s7 = scalar_lea.sflag [#allocation3], 1
    %8 = vsyncpa %s7, 0
    loop: start=0, step=1, limit=4
    $region2: #{tpu_custom_call.1} parent=1 // loop_pre_header
      _
    $region3: #{tpu_custom_call.1} parent=1 // loop_header
      %s10 = sphi 0, %s14
      %p11 = scmp.ge.s32.totalorder %s10, 4
      %s20 = sphi 0, %s22
      %s23 = sphi 0, %s20
      %s24 = sphi 0, %s23
      %s40 = sphi 0, %s24
      %s46 = sphi 0, %s48
      %s49 = sphi 0, %s46
      %s50 = sphi 0, %s49
      %s66 = sphi 0, %s50
    $region4: #{tpu_custom_call.1} parent=1 // loop_header_branch
      %13 = sbr.rel (%p11) target = $region8
    $region5: #{tpu_custom_call.1} parent=1 // loop_body
      %s15 = ssub.s32 %s10, 1
      %s16 = ssub.s32 %s10, 2
      %s17 = sadd.s32 %s10, 1
      %s18 = ssub.s32 %s10, %s17
      %p19 = scmp.eq.s32.totalorder %s18, 0
      %s21 = sadd.s32 %s20, 1
      %s22 = scalar_select %p19, %s20, %s21
      %p25 = pneg %p19
      %p26 = scmp.eq.s32.totalorder %s10, 1
      %p27 = por %p25, %p26
      %p28 = scmp.ne.s32.totalorder %s20, %s23
      %p29 = scmp.eq.s32.totalorder %s10, 0
      %p30 = por %p28, %p29
      %p31 = scmp.ne.s32.totalorder %s20, %s23
      %p32 = scmp.eq.s32.totalorder %s15, 1
      %p33 = por %p31, %p32
      %p34 = scmp.ne.s32.totalorder %s23, %s24
      %p35 = scmp.eq.s32.totalorder %s15, 0
      %p36 = por %p34, %p35
      %p37 = scmp.ne.s32.totalorder %s23, %s24
      %p38 = scmp.eq.s32.totalorder %s16, 1
      %p39 = por %p37, %p38
      %p41 = scmp.ne.s32.totalorder %s24, %s40
      %p42 = scmp.eq.s32.totalorder %s16, 0
      %p43 = por %p41, %p42
      %s44 = ssub.s32 %s10, %s17
      %p45 = scmp.eq.s32.totalorder %s44, 0
      %s47 = sadd.s32 %s46, 1
      %s48 = scalar_select %p45, %s46, %s47
      %p51 = pneg %p45
      %p52 = scmp.eq.s32.totalorder %s10, 1
      %p53 = por %p51, %p52
      %p54 = scmp.ne.s32.totalorder %s46, %s49
      %p55 = scmp.eq.s32.totalorder %s10, 0
      %p56 = por %p54, %p55
      %p57 = scmp.ne.s32.totalorder %s46, %s49
      %p58 = scmp.eq.s32.totalorder %s15, 1
      %p59 = por %p57, %p58
      %p60 = scmp.ne.s32.totalorder %s49, %s50
      %p61 = scmp.eq.s32.totalorder %s15, 0
      %p62 = por %p60, %p61
      %p63 = scmp.ne.s32.totalorder %s49, %s50
      %p64 = scmp.eq.s32.totalorder %s16, 1
      %p65 = por %p63, %p64
      %p67 = scmp.ne.s32.totalorder %s50, %s66
      %p68 = scmp.eq.s32.totalorder %s16, 0
      %p69 = por %p67, %p68
      %p70 = scmp.le.s32.totalorder 1, %s10
      %p71 = scmp.lt.s32.totalorder %s10, 3
      %p72 = pnand %p70, %p71
      %p73 = pneg %p72
      // Predicated region
      $region9: #{tpu_custom_call.1} parent=5 // pred_check
        _
      $region10: #{tpu_custom_call.1} parent=5 // pred_check_branch
        %75 = sbr.rel (%p72) target = $region12
      $region11: #{tpu_custom_call.1} parent=5 // pred_region
        %s76 = ssub.s32 %s10, 1
      $region12: #{tpu_custom_call.1} parent=5 // pred_fallthru
        _
      %p77 = scmp.lt.s32.totalorder %s10, 2
      // Predicated region
      $region13: #{tpu_custom_call.1} parent=5 // pred_check
        %p78 = pneg %p77
      $region14: #{tpu_custom_call.1} parent=5 // pred_check_branch
        %80 = sbr.rel (%p78) target = $region16
      $region15: #{tpu_custom_call.1} parent=5 // pred_region
        // Predicated region
        $region17: #{tpu_custom_call.1} parent=15 // pred_check
          %p81 = pneg %p30
        $region18: #{tpu_custom_call.1} parent=15 // pred_check_branch
          %83 = sbr.rel (%p81) target = $region20
        $region19: #{tpu_custom_call.1} parent=15 // pred_region
          %s84 = sand.u32 %s20, 1
          %s85 = scalar_lea.sflag [#allocation3], %s84
          %s86 = sand.u32 %s20, 1
          %s87 = smul.addr %s86, 64
          %s88 = scalar_lea.vmem [#allocation2], %s87
          %s89 = smul.u32 4, %s10
          %91 = vsyncadd %s85, 0
          %s92 = smul.addr %s89, 2
          %s93 = smul.addr %s92, 8
          %s94 = scalar_lea.hbm %s0, %s93
          %s95 = sshll.u32 %s94, 4
          %s96 = int_to_ptr.hbm [resolvable:$true] %s95
          %s97 = sshll.u32 %s88, 4
          %s98 = int_to_ptr.vmem [resolvable:$true] %s97
          %103 = dma.hbm_to_vmem [thread:$0]  %s96, 1024, %s98, %s85, 128, 128, 8
        $region20: #{tpu_custom_call.1} parent=15 // pred_fallthru
          _
      $region16: #{tpu_custom_call.1} parent=5 // pred_fallthru
        _
      %p104 = scmp.le.s32.totalorder 1, %s10
      %p105 = scmp.lt.s32.totalorder %s10, 3
      %p106 = pnand %p104, %p105
      %p107 = pneg %p106
      // Predicated region
      $region21: #{tpu_custom_call.1} parent=5 // pred_check
        _
      $region22: #{tpu_custom_call.1} parent=5 // pred_check_branch
        %109 = sbr.rel (%p106) target = $region24
      $region23: #{tpu_custom_call.1} parent=5 // pred_region
        %s110 = ssub.s32 %s10, 1
        %s111 = sand.u32 %s23, 1
        %s112 = scalar_lea.sflag [#allocation3], %s111
        %s113 = sand.u32 %s23, 1
        %s114 = smul.addr %s113, 64
        %s115 = scalar_lea.vmem [#allocation2], %s114
        // Predicated region
        $region25: #{tpu_custom_call.1} parent=23 // pred_check
          %p116 = pneg %p36
        $region26: #{tpu_custom_call.1} parent=23 // pred_check_branch
          %118 = sbr.rel (%p116) target = $region28
        $region27: #{tpu_custom_call.1} parent=23 // pred_region
          %120 = dma.done %s112, 1024
        $region28: #{tpu_custom_call.1} parent=23 // pred_fallthru
          _
        %s121 = sand.u32 %s23, 1
        %s122 = scalar_lea.sflag [#allocation3], %s121
        %s123 = sand.u32 %s23, 1
        %s124 = smul.addr %s123, 64
        %s125 = scalar_lea.vmem [#allocation2], %s124
        %p126 = pneg %p36
        %p127 = pneg %p33
        %p128 = pneg %p62
        %p129 = pneg %p59
        %s130 = smul.u32 4, %s15
        %p131 = scmp.lt.s32.totalorder %s130, 7
        %s132 = scalar_select %p131, %s130, 7
        %s133 = smul.addr %s132, 3
        %s134 = smul.addr %s133, 8
        %s135 = scalar_lea.vmem %s1, %s134
        %s136 = smul.u32 4, %s15
        %s137 = smul.u32 4, %s15
        %p138 = scmp.lt.s32.totalorder %s137, 7
        %s139 = scalar_select %p138, %s137, 7
        %s140 = smul.addr %s139, 3
        %s141 = smul.addr %s140, 8
        %s142 = scalar_lea.vmem %s1, %s141
        %s143 = smul.u32 4, %s15
        %v144 = vld [vmem:[%s115] sm:$0xff]
        %v145 = vld [vmem:[%s115 + $0x8] sm:$0xff]
        %v146 = vld [vmem:[%s115 + $0x10] sm:$0xff]
        %v147 = vld [vmem:[%s115 + $0x18] sm:$0xff]
        %v148 = vld [vmem:[%s115 + $0x20] sm:$0xff]
        %v149 = vld [vmem:[%s115 + $0x28] sm:$0xff]
        %v150 = vld [vmem:[%s115 + $0x30] sm:$0xff]
        %v151 = vld [vmem:[%s115 + $0x38] sm:$0xff]
        %vm152 = vcmask 130048
        %153 = vst.msk [vmem:[%s142] sm:$0xff] %vm152, %v144
        %154 = vst.msk [vmem:[%s142 + $0x8] sm:$0xff] %vm152, %v145
        %155 = vst.msk [vmem:[%s142 + $0x18] sm:$0xff] %vm152, %v146
        %156 = vst.msk [vmem:[%s142 + $0x20] sm:$0xff] %vm152, %v147
        %157 = vst.msk [vmem:[%s142 + $0x30] sm:$0xff] %vm152, %v148
        %158 = vst.msk [vmem:[%s142 + $0x38] sm:$0xff] %vm152, %v149
        %159 = vst.msk [vmem:[%s142 + $0x48] sm:$0xff] %vm152, %v150
        %160 = vst.msk [vmem:[%s142 + $0x50] sm:$0xff] %vm152, %v151
        %vm161 = vcmask 131072
        %162 = vst.msk [vmem:[%s142 + $0x10] sm:$0x1] %vm161, 0.0
        %163 = vst.msk [vmem:[%s142 + $0x28] sm:$0x1] %vm161, 0.0
        %164 = vst.msk [vmem:[%s142 + $0x40] sm:$0x1] %vm161, 0.0
        %165 = vst.msk [vmem:[%s142 + $0x58] sm:$0x1] %vm161, 0.0
        %vm166 = vcmask 138368
        %167 = vst.msk [vmem:[%s142] sm:$0xff] %vm166, 0.0
        %168 = vst.msk [vmem:[%s142 + $0x8] sm:$0xff] %vm166, 0.0
        %vm169 = vcmask 131200
        %170 = vst.msk [vmem:[%s142 + $0x10] sm:$0x1] %vm169, 0.0
        %171 = vst.msk [vmem:[%s142 + $0x18] sm:$0xff] %vm166, 0.0
        %172 = vst.msk [vmem:[%s142 + $0x20] sm:$0xff] %vm166, 0.0
        %173 = vst.msk [vmem:[%s142 + $0x28] sm:$0x1] %vm169, 0.0
        %174 = vst.msk [vmem:[%s142 + $0x30] sm:$0xff] %vm166, 0.0
        %175 = vst.msk [vmem:[%s142 + $0x38] sm:$0xff] %vm166, 0.0
        %176 = vst.msk [vmem:[%s142 + $0x40] sm:$0x1] %vm169, 0.0
        %177 = vst.msk [vmem:[%s142 + $0x48] sm:$0xff] %vm166, 0.0
        %178 = vst.msk [vmem:[%s142 + $0x50] sm:$0xff] %vm166, 0.0
        %179 = vst.msk [vmem:[%s142 + $0x58] sm:$0x1] %vm169, 0.0
        %s180 = smul.u32 4, %s15
        %p181 = scmp.lt.s32.totalorder %s180, 7
        %s182 = scalar_select %p181, %s180, 7
        %s183 = smul.addr %s182, 3
        %s184 = smul.addr %s183, 8
        %s185 = scalar_lea.vmem %s1, %s184
        // Predicated region
        $region29: #{tpu_custom_call.1} parent=23 // pred_check
          %p186 = pneg %p59
        $region30: #{tpu_custom_call.1} parent=23 // pred_check_branch
          %188 = sbr.rel (%p186) target = $region32
        $region31: #{tpu_custom_call.1} parent=23 // pred_region
          %s189 = smul.u32 4, %s15
        $region32: #{tpu_custom_call.1} parent=23 // pred_fallthru
          _
      $region24: #{tpu_custom_call.1} parent=5 // pred_fallthru
        _
      %p190 = scmp.le.s32.totalorder 2, %s10
      // Predicated region
      $region33: #{tpu_custom_call.1} parent=5 // pred_check
        %p191 = pneg %p190
      $region34: #{tpu_custom_call.1} parent=5 // pred_check_branch
        %193 = sbr.rel (%p191) target = $region36
      $region35: #{tpu_custom_call.1} parent=5 // pred_region
        %s194 = ssub.s32 %s10, 2
        // Predicated region
        $region37: #{tpu_custom_call.1} parent=35 // pred_check
          %p195 = pneg %p65
        $region38: #{tpu_custom_call.1} parent=35 // pred_check_branch
          %197 = sbr.rel (%p195) target = $region40
        $region39: #{tpu_custom_call.1} parent=35 // pred_region
          %s198 = smul.u32 4, %s16
          %p199 = scmp.lt.s32.totalorder %s198, 7
          %s200 = scalar_select %p199, %s198, 7
          %s201 = smul.addr %s200, 3
          %s202 = smul.addr %s201, 8
          %s203 = scalar_lea.vmem %s1, %s202
        $region40: #{tpu_custom_call.1} parent=35 // pred_fallthru
          _
      $region36: #{tpu_custom_call.1} parent=5 // pred_fallthru
        _
    $region6: #{tpu_custom_call.1} parent=1 // loop_footer
      %s14 = sadd.s32 1, %s10
    $region7: #{tpu_custom_call.1} parent=1 // loop_footer_branch
      %9 = sbr.rel target = $region3
    $region8: #{tpu_custom_call.1} parent=1 // loop_exit
      _
    %204 = vsyncpa [#allocation3], 1
    %s205 = scalar_lea.sflag [#allocation3], 1
    %206 = vsyncpa %s205, 1

</llo_original>
